<compile_context>
chip_gen: v7x
topology: tpu7x:2x2x1
jax: 0.10.0
libtpu: 0.0.40
codegen_flags: <defaults>
</compile_context>

<pallas_src>
import jax
import jax.numpy as jnp
from jax.experimental import pallas as pl
from jax.experimental.pallas import tpu as pltpu

_PAD = 32  # padded feature width for the fused layer chain (max real width = 20)


def _mlp_relu_kernel(mono_ref, nonmono_ref, w_ref, fb_ref, out_ref):
    """mono_ref: [B, Fm] f32, nonmono_ref: [B, Fnm] f32.
    w_ref: [4, P, P] bf16 fused weights
        slot 0: layer-1 rows for mono, slot 1: layer-1 rows for nonmono,
        slot 2: fused layer 2, slot 3: fused layer 3.
    fb_ref: [4, P] f32: rows 0-2 fused biases (row 2 lane P-1 = 1.0 bias
        carrier), row 3 = last-layer reduce row (lane P-1 = summed last bias).
    Chain state h = [y | x | 0-padding]; padded lanes stay exactly 0
    (zero weight rows/cols + zero bias + relu/hardtanh(0) == 0)."""
    f32, bf16 = jnp.float32, jnp.bfloat16
    Fm = mono_ref.shape[1]
    Fnm = nonmono_ref.shape[1]

    # Layer 1: non_mono_fc_in + mono_fc_in (cat([mono, nonmono]) expressed as
    # two dots against aligned row blocks), relu.
    h = (jnp.dot(mono_ref[...].astype(bf16), w_ref[0, :Fm, :],
                 preferred_element_type=f32)
         + jnp.dot(nonmono_ref[...].astype(bf16), w_ref[1, :Fnm, :],
                   preferred_element_type=f32)
         + fb_ref[0:1, :])
    h = jnp.maximum(h, 0.0)

    # Layer 2: mono/non_mono_submods_out, hardtanh(0, 1); dropout(p=0)=id.
    h = jnp.dot(h.astype(bf16), w_ref[2], preferred_element_type=f32) + fb_ref[1:2, :]
    h = jnp.clip(h, 0.0, 1.0)

    # Layer 3: mono/non_mono_submods_in (cat([x, y]) wiring folded into the
    # weight blocks), relu.  Lane P-1 becomes exactly 1.0 (bias carrier).
    h = jnp.dot(h.astype(bf16), w_ref[3], preferred_element_type=f32) + fb_ref[2:3, :]
    h = jnp.maximum(h, 0.0)

    # Layer 4: mono_fc_last + non_mono_fc_last as a VPU multiply + lane reduce
    # (f32); lane P-1 contributes 1.0 * (b_m_last + b_nm_last).
    # normalize_regression=False -> no sigmoid.
    o = jnp.sum(h * fb_ref[3:4, :], axis=-1, keepdims=True)
    out_ref[...] = o.astype(out_ref.dtype)


def pack_weights(params, mono_feature, non_mono_feature,
                 mono_hidden=5, non_mono_hidden=5, bottleneck=10):
    """Fold the 8 PyTorch Linears into block-structured fused layers.
    Returns (w_pack [4, P, P] bf16, fb_pack [4, P] f32)."""
    (w_nm_in, b_nm_in, w_m_in, b_m_in, w_m_out, b_m_out, w_nm_out, b_nm_out,
     w_m_sub_in, b_m_sub_in, w_nm_sub_in, b_nm_sub_in,
     w_m_last, b_m_last, w_nm_last, b_nm_last) = params
    Fm, Fnm = mono_feature, non_mono_feature
    Hm, Hnm, BNK = mono_hidden, non_mono_hidden, bottleneck
    P = _PAD
    W = Hnm + Hm  # fused hidden width ([y | x]) after layers 1 and 3

    w_pack = jnp.zeros((4, P, P), jnp.float32)
    fb_pack = jnp.zeros((4, P), jnp.float32)

    # Layer 1, mono rows (slot 0): feed only the x columns.
    w_pack = w_pack.at[0, :Fm, Hnm:W].set(w_m_in[:Fm, :])
    # Layer 1, nonmono rows (slot 1): feed y (w_nm_in) and x (w_m_in tail).
    w_pack = w_pack.at[1, :Fnm, :Hnm].set(w_nm_in)
    w_pack = w_pack.at[1, :Fnm, Hnm:W].set(w_m_in[Fm:, :])
    fb_pack = fb_pack.at[0, :Hnm].set(b_nm_in[0])
    fb_pack = fb_pack.at[0, Hnm:W].set(b_m_in[0])

    # Layer 2 (slot 2): [y | x] -> [y_out | x_out] (width 2*BNK).
    w_pack = w_pack.at[2, :Hnm, :BNK].set(w_nm_out)
    w_pack = w_pack.at[2, Hnm:W, BNK:2 * BNK].set(w_m_out)
    fb_pack = fb_pack.at[1, :BNK].set(b_nm_out[0])
    fb_pack = fb_pack.at[1, BNK:2 * BNK].set(b_m_out[0])

    # Layer 3 (slot 3): [y_out | x_out] -> [y | x]; cat([x, y]) wiring of
    # mono_submods_in expressed via its split row halves.
    w_pack = w_pack.at[3, :BNK, :Hnm].set(w_nm_sub_in)
    w_pack = w_pack.at[3, :BNK, Hnm:W].set(w_m_sub_in[BNK:, :])   # y_out half
    w_pack = w_pack.at[3, BNK:2 * BNK, Hnm:W].set(w_m_sub_in[:BNK, :])  # x_out half
    fb_pack = fb_pack.at[2, :Hnm].set(b_nm_sub_in[0])
    fb_pack = fb_pack.at[2, Hnm:W].set(b_m_sub_in[0])
    # Bias-carrier lane: relu(0 + 1.0) == 1.0, so the last-layer bias can be
    # added by the final reduce with zero extra inputs.
    fb_pack = fb_pack.at[2, P - 1].set(1.0)

    # Last-layer reduce row (kept f32, executed on the VPU):
    fb_pack = fb_pack.at[3, :Hnm].set(w_nm_last[:, 0])
    fb_pack = fb_pack.at[3, Hnm:W].set(w_m_last[:, 0])
    fb_pack = fb_pack.at[3, P - 1].set((b_m_last + b_nm_last)[0, 0])

    return w_pack.astype(jnp.bfloat16), fb_pack


def mlp_relu_forward(mono, nonmono, w_pack, fb_pack):
    """Single pallas_call, four VMEM-resident inputs, no host-side prep ops."""
    B = mono.shape[0]
    vmem = pl.BlockSpec(memory_space=pltpu.MemorySpace.VMEM)
    return pl.pallas_call(
        _mlp_relu_kernel,
        out_shape=jax.ShapeDtypeStruct((B, 1), jnp.float32),
        in_specs=[vmem, vmem, vmem, vmem],
        out_specs=vmem,
    )(mono, nonmono, w_pack, fb_pack)


def init_params(key, mono_feature, non_mono_feature,
                mono_hidden=5, non_mono_hidden=5, bottleneck=10):
    """Deterministic PyTorch-Linear-style init: U(-1/sqrt(fan_in), 1/sqrt(fan_in)).
    Weights stored as [in, out]; biases as [1, out]."""
    def linear_params(k, fan_in, fan_out):
        kw, kb = jax.random.split(k)
        bound = 1.0 / (fan_in ** 0.5)
        w = jax.random.uniform(kw, (fan_in, fan_out), jnp.float32, -bound, bound)
        b = jax.random.uniform(kb, (1, fan_out), jnp.float32, -bound, bound)
        return [w, b]

    keys = jax.random.split(key, 8)
    params = []
    params += linear_params(keys[0], non_mono_feature, non_mono_hidden)             # non_mono_fc_in
    params += linear_params(keys[1], mono_feature + non_mono_feature, mono_hidden)  # mono_fc_in
    params += linear_params(keys[2], mono_hidden, bottleneck)                       # mono_submods_out[0]
    params += linear_params(keys[3], non_mono_hidden, bottleneck)                   # non_mono_submods_out[0]
    params += linear_params(keys[4], 2 * bottleneck, mono_hidden)                   # mono_submods_in[0]
    params += linear_params(keys[5], bottleneck, non_mono_hidden)                   # non_mono_submods_in[0]
    params += linear_params(keys[6], mono_hidden, 1)                                # mono_fc_last
    params += linear_params(keys[7], non_mono_hidden, 1)                            # non_mono_fc_last
    return params


def _reference_forward(mono, nonmono, params):
    """Pure-JAX f32 reference of the PyTorch forward (structural check)."""
    (w_nm_in, b_nm_in, w_m_in, b_m_in, w_m_out, b_m_out, w_nm_out, b_nm_out,
     w_m_sub_in, b_m_sub_in, w_nm_sub_in, b_nm_sub_in,
     w_m_last, b_m_last, w_nm_last, b_nm_last) = params
    relu = lambda v: jnp.maximum(v, 0.0)
    ht = lambda v: jnp.clip(v, 0.0, 1.0)   # F.hardtanh(min_val=0.0, max_val=1.0)
    y = relu(nonmono @ w_nm_in + b_nm_in)
    x = relu(jnp.concatenate([mono, nonmono], axis=1) @ w_m_in + b_m_in)
    x = ht(x @ w_m_out + b_m_out)
    y = ht(y @ w_nm_out + b_nm_out)
    x = relu(jnp.concatenate([x, y], axis=1) @ w_m_sub_in + b_m_sub_in)
    y = relu(y @ w_nm_sub_in + b_nm_sub_in)
    return (x @ w_m_last + b_m_last) + (y @ w_nm_last + b_nm_last)


def _emulated_forward(mono, nonmono, w_pack, fb_pack):
    """Plain-JAX mirror of the kernel math (same bf16 packs) for a tight check."""
    f32, bf16 = jnp.float32, jnp.bfloat16
    Fm, Fnm = mono.shape[1], nonmono.shape[1]
    h = (jnp.dot(mono.astype(bf16), w_pack[0, :Fm, :], preferred_element_type=f32)
         + jnp.dot(nonmono.astype(bf16), w_pack[1, :Fnm, :], preferred_element_type=f32)
         + fb_pack[0:1, :])
    h = jnp.maximum(h, 0.0)
    h = jnp.clip(jnp.dot(h.astype(bf16), w_pack[2], preferred_element_type=f32)
                 + fb_pack[1:2, :], 0.0, 1.0)
    h = jnp.maximum(jnp.dot(h.astype(bf16), w_pack[3], preferred_element_type=f32)
                    + fb_pack[2:3, :], 0.0)
    return jnp.sum(h * fb_pack[3:4, :], axis=-1, keepdims=True)


if __name__ == "__main__":
    batch = 8
    mono_feature = 4
    non_mono_feature = 4

    key = jax.random.PRNGKey(0)
    k_mono, k_nonmono, k_params = jax.random.split(key, 3)
    mono = jax.random.normal(k_mono, (batch, mono_feature), jnp.float32)
    nonmono = jax.random.normal(k_nonmono, (batch, non_mono_feature), jnp.float32)
    params = init_params(k_params, mono_feature, non_mono_feature)
    w_pack, fb_pack = pack_weights(params, mono_feature, non_mono_feature)

    out = mlp_relu_forward(mono, nonmono, w_pack, fb_pack)
    out = jax.block_until_ready(out)
    assert out.shape == (batch, 1)

    # Tight check: kernel vs identical bf16-packed math in plain JAX.
    emu = _emulated_forward(mono, nonmono, w_pack, fb_pack)
    assert jnp.allclose(out, emu, atol=1e-4, rtol=1e-4), "mismatch vs packed-math reference"

    # Loose check: kernel vs unfused f32 reference (bf16 matmul operands =>
    # ~1e-2-scale numerical drift is expected and acceptable).
    ref = _reference_forward(mono, nonmono, params)
    assert jnp.allclose(out, ref, atol=1e-1, rtol=1e-1), "mismatch vs f32 reference"

    print("KERNEL_OK")
</pallas_src>

<mosaic_0001>
module attributes {stable_mosaic.version = 11 : i64} {
  func.func @_mlp_relu_kernel(%arg0: memref<8x4xf32, #tpu.memory_space<vmem>>, %arg1: memref<8x4xf32, #tpu.memory_space<vmem>>, %arg2: memref<4x32x32xbf16, #tpu.memory_space<vmem>>, %arg3: memref<4x32xf32, #tpu.memory_space<vmem>>, %arg4: memref<8x1xf32, #tpu.memory_space<vmem>>) attributes {dimension_semantics = [], scalar_prefetch = 0 : i64, scratch_operands = 0 : i64, tpu.core_type = #tpu.core_type<tc>} {
    %c0 = arith.constant 0 : index
    %c0_0 = arith.constant 0 : index
    %0 = vector.load %arg0[%c0, %c0_0] : memref<8x4xf32, #tpu.memory_space<vmem>>, vector<8x4xf32>
    %1 = arith.truncf %0 : vector<8x4xf32> to vector<8x4xbf16>
    %c0_1 = arith.constant 0 : index
    %c0_2 = arith.constant 0 : index
    %c0_3 = arith.constant 0 : index
    %2 = vector.load %arg2[%c0_1, %c0_2, %c0_3] : memref<4x32x32xbf16, #tpu.memory_space<vmem>>, vector<1x4x32xbf16>
    %3 = vector.shape_cast %2 : vector<1x4x32xbf16> to vector<4x32xbf16>
    %cst = arith.constant dense<0.000000e+00> : vector<8x32xf32>
    %4 = tpu.matmul %1, %3, %cst {dimension_numbers = #tpu.dot_dimension_numbers<[1], [0], [0], [1], [0, 0, 1, 1], [], []>} : vector<8x4xbf16>, vector<4x32xbf16>, vector<8x32xf32> -> vector<8x32xf32>
    %c0_4 = arith.constant 0 : index
    %c0_5 = arith.constant 0 : index
    %5 = vector.load %arg1[%c0_4, %c0_5] : memref<8x4xf32, #tpu.memory_space<vmem>>, vector<8x4xf32>
    %6 = arith.truncf %5 : vector<8x4xf32> to vector<8x4xbf16>
    %c1 = arith.constant 1 : index
    %c0_6 = arith.constant 0 : index
    %c0_7 = arith.constant 0 : index
    %7 = vector.load %arg2[%c1, %c0_6, %c0_7] : memref<4x32x32xbf16, #tpu.memory_space<vmem>>, vector<1x4x32xbf16>
    %8 = vector.shape_cast %7 : vector<1x4x32xbf16> to vector<4x32xbf16>
    %cst_8 = arith.constant dense<0.000000e+00> : vector<8x32xf32>
    %9 = tpu.matmul %6, %8, %cst_8 {dimension_numbers = #tpu.dot_dimension_numbers<[1], [0], [0], [1], [0, 0, 1, 1], [], []>} : vector<8x4xbf16>, vector<4x32xbf16>, vector<8x32xf32> -> vector<8x32xf32>
    %10 = arith.addf %4, %9 : vector<8x32xf32>
    %c0_9 = arith.constant 0 : index
    %c0_10 = arith.constant 0 : index
    %11 = vector.load %arg3[%c0_9, %c0_10] : memref<4x32xf32, #tpu.memory_space<vmem>>, vector<1x32xf32>
    %12 = vector.broadcast %11 : vector<1x32xf32> to vector<8x32xf32>
    %13 = arith.addf %10, %12 : vector<8x32xf32>
    %cst_11 = arith.constant 0.000000e+00 : f32
    %14 = vector.broadcast %cst_11 : f32 to vector<8x32xf32>
    %15 = arith.maximumf %13, %14 : vector<8x32xf32>
    %16 = arith.truncf %15 : vector<8x32xf32> to vector<8x32xbf16>
    %c2 = arith.constant 2 : index
    %c0_12 = arith.constant 0 : index
    %c0_13 = arith.constant 0 : index
    %17 = vector.load %arg2[%c2, %c0_12, %c0_13] : memref<4x32x32xbf16, #tpu.memory_space<vmem>>, vector<1x32x32xbf16>
    %18 = vector.shape_cast %17 : vector<1x32x32xbf16> to vector<32x32xbf16>
    %cst_14 = arith.constant dense<0.000000e+00> : vector<8x32xf32>
    %19 = tpu.matmul %16, %18, %cst_14 {dimension_numbers = #tpu.dot_dimension_numbers<[1], [0], [0], [1], [0, 0, 1, 1], [], []>} : vector<8x32xbf16>, vector<32x32xbf16>, vector<8x32xf32> -> vector<8x32xf32>
    %c1_15 = arith.constant 1 : index
    %c0_16 = arith.constant 0 : index
    %20 = vector.load %arg3[%c1_15, %c0_16] : memref<4x32xf32, #tpu.memory_space<vmem>>, vector<1x32xf32>
    %21 = vector.broadcast %20 : vector<1x32xf32> to vector<8x32xf32>
    %22 = arith.addf %19, %21 : vector<8x32xf32>
    %cst_17 = arith.constant 0.000000e+00 : f32
    %cst_18 = arith.constant 1.000000e+00 : f32
    %23 = vector.broadcast %cst_17 : f32 to vector<8x32xf32>
    %24 = arith.maximumf %23, %22 : vector<8x32xf32>
    %25 = vector.broadcast %cst_18 : f32 to vector<8x32xf32>
    %26 = arith.minimumf %25, %24 : vector<8x32xf32>
    %27 = arith.truncf %26 : vector<8x32xf32> to vector<8x32xbf16>
    %c3 = arith.constant 3 : index
    %c0_19 = arith.constant 0 : index
    %c0_20 = arith.constant 0 : index
    %28 = vector.load %arg2[%c3, %c0_19, %c0_20] : memref<4x32x32xbf16, #tpu.memory_space<vmem>>, vector<1x32x32xbf16>
    %29 = vector.shape_cast %28 : vector<1x32x32xbf16> to vector<32x32xbf16>
    %cst_21 = arith.constant dense<0.000000e+00> : vector<8x32xf32>
    %30 = tpu.matmul %27, %29, %cst_21 {dimension_numbers = #tpu.dot_dimension_numbers<[1], [0], [0], [1], [0, 0, 1, 1], [], []>} : vector<8x32xbf16>, vector<32x32xbf16>, vector<8x32xf32> -> vector<8x32xf32>
    %c2_22 = arith.constant 2 : index
    %c0_23 = arith.constant 0 : index
    %31 = vector.load %arg3[%c2_22, %c0_23] : memref<4x32xf32, #tpu.memory_space<vmem>>, vector<1x32xf32>
    %32 = vector.broadcast %31 : vector<1x32xf32> to vector<8x32xf32>
    %33 = arith.addf %30, %32 : vector<8x32xf32>
    %cst_24 = arith.constant 0.000000e+00 : f32
    %34 = vector.broadcast %cst_24 : f32 to vector<8x32xf32>
    %35 = arith.maximumf %33, %34 : vector<8x32xf32>
    %c3_25 = arith.constant 3 : index
    %c0_26 = arith.constant 0 : index
    %36 = vector.load %arg3[%c3_25, %c0_26] : memref<4x32xf32, #tpu.memory_space<vmem>>, vector<1x32xf32>
    %37 = vector.broadcast %36 : vector<1x32xf32> to vector<8x32xf32>
    %38 = arith.mulf %35, %37 : vector<8x32xf32>
    %cst_27 = arith.constant dense<0.000000e+00> : vector<8xf32>
    %39 = vector.multi_reduction <add>, %38, %cst_27 [1] : vector<8x32xf32> to vector<8xf32>
    %40 = vector.shape_cast %39 : vector<8xf32> to vector<8x1xf32>
    %c0_28 = arith.constant 0 : index
    %c0_29 = arith.constant 0 : index
    %41 = vector.load %arg4[%c0_28, %c0_29] : memref<8x1xf32, #tpu.memory_space<vmem>>, vector<8x1xf32>
    tpu.vector_store %arg4[%c0_28, %c0_29], %40 {strides = array<i32>} : memref<8x1xf32, #tpu.memory_space<vmem>>, vector<8x1xf32>,
    return
  }
}

</mosaic_0001>

<llo_original>
// kernel: tpu_custom_call.1
$region0: #{tpu_custom_call.1}
  #allocation0 [shape = 'u32[]', space=smem, size = 0x4, offset = 0x4, fixed_abs, tag = 'smem constant byte address 0x4 - core index']
  #allocation1 [shape = 'u32[144,128]{1,0:T(1,128)}', space=vmem, size = 0x12000, scoped, tag = 'internal scratch']
  %s0 = inlined_call_operand.vmem [shape: f32[8,4], index: 0, kind: input, shape index: {}]
  %s1 = inlined_call_operand.vmem [shape: f32[8,4], index: 1, kind: input, shape index: {}]
  %s2 = inlined_call_operand.hbm [shape: bf16[4,32,32], index: 2, kind: input, shape index: {}]
  %s3 = inlined_call_operand.vmem [shape: f32[4,32], index: 3, kind: input, shape index: {}]
  %s4 = inlined_call_operand.vmem [shape: f32[8,1], index: 4, kind: output, shape index: {}]
  %s5 = sld [smem:[#allocation0]]
  $region30: #{tpu_custom_call.1} parent=0
    _
  %s7 = ssub.s32 1, %s5
  %s8 = scalar_select 0, %s7, %s5
  $region1: #{tpu_custom_call.1} parent=0
    #allocation2 [shape = 'u8[32768]{0}', space=vmem, size = 0x8000, scoped, tag = 'input window, operand 2, single buffered']
    #allocation3 [shape = 's32[1]{0}', space=sflag, size = 0x4, scoped, tag = 'scoped memory for tpu_custom_call.1']
    %9 = vsyncpa [#allocation3], 0
    // Predicated region
    $region2: #{tpu_custom_call.1} parent=1 // pred_check
      _
    $region3: #{tpu_custom_call.1} parent=1 // pred_check_branch
      %11 = sbr.rel (0) target = $region5
    $region4: #{tpu_custom_call.1} parent=1 // pred_region
      _
    $region5: #{tpu_custom_call.1} parent=1 // pred_fallthru
      _
    // Predicated region
    $region6: #{tpu_custom_call.1} parent=1 // pred_check
      _
    $region7: #{tpu_custom_call.1} parent=1 // pred_check_branch
      %13 = sbr.rel (0) target = $region9
    $region8: #{tpu_custom_call.1} parent=1 // pred_region
      _
    $region9: #{tpu_custom_call.1} parent=1 // pred_fallthru
      _
    // Predicated region
    $region10: #{tpu_custom_call.1} parent=1 // pred_check
      _
    $region11: #{tpu_custom_call.1} parent=1 // pred_check_branch
      %15 = sbr.rel (0) target = $region13
    $region12: #{tpu_custom_call.1} parent=1 // pred_region
      %s17 = ssub.s32 1024, 1024
      %18 = vsyncadd [#allocation3], %s17
      %s19 = sshll.u32 [#allocation2], 4
      %s20 = int_to_ptr.vmem [resolvable:$true] %s19
      %25 = dma.hbm_to_vmem [thread:$0]  %s2, 1024, %s20, [#allocation3], 64, 64, 4
    $region13: #{tpu_custom_call.1} parent=1 // pred_fallthru
      _
    // Predicated region
    $region14: #{tpu_custom_call.1} parent=1 // pred_check
      _
    $region15: #{tpu_custom_call.1} parent=1 // pred_check_branch
      %27 = sbr.rel (0) target = $region17
    $region16: #{tpu_custom_call.1} parent=1 // pred_region
      _
    $region17: #{tpu_custom_call.1} parent=1 // pred_fallthru
      _
    // Predicated region
    $region18: #{tpu_custom_call.1} parent=1 // pred_check
      _
    $region19: #{tpu_custom_call.1} parent=1 // pred_check_branch
      %29 = sbr.rel (0) target = $region21
    $region20: #{tpu_custom_call.1} parent=1 // pred_region
      %30 = dma.done [#allocation3], 1024
    $region21: #{tpu_custom_call.1} parent=1 // pred_fallthru
      _
    %v32 = vld [vmem:[%s0] sm:$0xff]
    %v33 = vpack.c.bf16 %v32, %v32
    %v34 = vld [vmem:[#allocation2] sm:$0x3]
    %v35 = vld [vmem:[%s1] sm:$0xff]
    %v36 = vpack.c.bf16 %v35, %v35
    %s37 = scalar_lea.vmem [#allocation2], 16
    %v38 = vld [vmem:[%s37] sm:$0x3]
    %vm39 = vcmask 31744
    %v41 = vsel %vm39, %v36, 0
    %vm43 = vcmask 1041408
    %v45 = vsel %vm43, %v38, 0
    %47 = vmatprep.subr.bf16.mxu0 0
    %48 = vmatpush1.bf16.msra.mxu0 %v45
    %49 = vmatprep.subr.bf16.mxu0 0
    %50 = vmatpush1.bf16.msra.mxu0 0
    %51 = vmatprep.subr.bf16.mxu0 0
    %52 = vmatpush1.bf16.msra.mxu0 0
    %53 = vmatprep.subr.bf16.mxu0 0
    %54 = vmatpush1.bf16.msra.mxu0 0
    %55 = vmatprep.subr.bf16.mxu0 0
    %56 = vmatpush1.bf16.msra.mxu0 0
    %57 = vmatprep.subr.bf16.mxu0 0
    %58 = vmatpush1.bf16.msra.mxu0 0
    %59 = vmatprep.subr.bf16.mxu0 0
    %60 = vmatpush1.bf16.msra.mxu0 0
    %61 = vmatprep.subr.bf16.mxu0 0
    %62 = vmatpush1.bf16.msra.mxu0 0
    %63 = vmatprep.subr.bf16.mxu0 0
    %64 = vmatpush1.bf16.msra.mxu0 0
    %65 = vmatprep.subr.bf16.mxu0 0
    %66 = vmatpush1.bf16.msra.mxu0 0
    %67 = vmatprep.subr.bf16.mxu0 0
    %68 = vmatpush1.bf16.msra.mxu0 0
    %69 = vmatprep.subr.bf16.mxu0 0
    %70 = vmatpush1.bf16.msra.mxu0 0
    %71 = vmatprep.subr.bf16.mxu0 0
    %72 = vmatpush1.bf16.msra.mxu0 0
    %73 = vmatprep.subr.bf16.mxu0 0
    %74 = vmatpush1.bf16.msra.mxu0 0
    %75 = vmatprep.subr.bf16.mxu0 0
    %76 = vmatpush1.bf16.msra.mxu0 0
    %77 = vmatprep.subr.bf16.mxu0 0
    %78 = vmatpush1.bf16.msra.mxu0 0
    %79 = vmatprep.mubr.bf16.mxu0 0
    %80 = vmatmul.mubr.bf16.gmra.mrb[0].mxu0 %v41
    %v81 = vpop.f32.mrb[0].mxu0
    %v82 = vadd.f32 0.0, %v81
    %v83 = vpop.f32.mrb[0].mxu0
    %v84 = vpop.f32.mrb[0].mxu0
    %v85 = vpop.f32.mrb[0].mxu0
    %86 = vdwg.mxu0
    %v88 = vsel %vm39, %v33, 0
    %v91 = vsel %vm43, %v34, 0
    %93 = vmatprep.subr.bf16.mxu0 0
    %94 = vmatpush1.bf16.msra.mxu0 %v91
    %95 = vmatprep.subr.bf16.mxu0 0
    %96 = vmatpush1.bf16.msra.mxu0 0
    %97 = vmatprep.subr.bf16.mxu0 0
    %98 = vmatpush1.bf16.msra.mxu0 0
    %99 = vmatprep.subr.bf16.mxu0 0
    %100 = vmatpush1.bf16.msra.mxu0 0
    %101 = vmatprep.subr.bf16.mxu0 0
    %102 = vmatpush1.bf16.msra.mxu0 0
    %103 = vmatprep.subr.bf16.mxu0 0
    %104 = vmatpush1.bf16.msra.mxu0 0
    %105 = vmatprep.subr.bf16.mxu0 0
    %106 = vmatpush1.bf16.msra.mxu0 0
    %107 = vmatprep.subr.bf16.mxu0 0
    %108 = vmatpush1.bf16.msra.mxu0 0
    %109 = vmatprep.subr.bf16.mxu0 0
    %110 = vmatpush1.bf16.msra.mxu0 0
    %111 = vmatprep.subr.bf16.mxu0 0
    %112 = vmatpush1.bf16.msra.mxu0 0
    %113 = vmatprep.subr.bf16.mxu0 0
    %114 = vmatpush1.bf16.msra.mxu0 0
    %115 = vmatprep.subr.bf16.mxu0 0
    %116 = vmatpush1.bf16.msra.mxu0 0
    %117 = vmatprep.subr.bf16.mxu0 0
    %118 = vmatpush1.bf16.msra.mxu0 0
    %119 = vmatprep.subr.bf16.mxu0 0
    %120 = vmatpush1.bf16.msra.mxu0 0
    %121 = vmatprep.subr.bf16.mxu0 0
    %122 = vmatpush1.bf16.msra.mxu0 0
    %123 = vmatprep.subr.bf16.mxu0 0
    %124 = vmatpush1.bf16.msra.mxu0 0
    %125 = vmatprep.mubr.bf16.mxu0 0
    %126 = vmatmul.mubr.bf16.gmra.mrb[0].mxu0 %v88
    %v127 = vpop.f32.mrb[0].mxu0
    %v128 = vadd.f32 %v82, %v127
    %v129 = vpop.f32.mrb[0].mxu0
    %v130 = vpop.f32.mrb[0].mxu0
    %v131 = vpop.f32.mrb[0].mxu0
    %132 = vdwg.mxu0
    %v133 = vld [vmem:[%s3] sm:$0x1]
    %v134 = vlaneseq
    %v135 = vshrl.u32 %v134, 7
    %v136 = vsub.s32 0, %v135
    %v137 = vrot.slane %v133, %v136
    %v138 = vadd.f32 %v128, %v137
    %v139 = vmax.f32 %v138, 0.0
    %v140 = vpack.c.bf16 %v139, %v139
    %s141 = scalar_lea.vmem [#allocation2], 32
    %v142 = vld [vmem:[%s141] sm:$0xf]
    %v143 = vld [vmem:[%s141 + $0x4] sm:$0xf]
    %v144 = vld [vmem:[%s141 + $0x8] sm:$0xf]
    %v145 = vld [vmem:[%s141 + $0xc] sm:$0xf]
    %v146 = vld [vmem:[%s3 + $0x1] sm:$0x1]
    %v147 = vlaneseq
    %v148 = vshrl.u32 %v147, 7
    %v149 = vsub.s32 0, %v148
    %v150 = vrot.slane %v146, %v149
    %v155 = vunpack.c.l.b16 %v142
    %v156 = vunpack.c.l.b16 %v143
    %v157 = vunpack.c.l.b16 %v144
    %v158 = vunpack.c.l.b16 %v145
    %v159 = vpack.c.b16 %v156, %v155
    %v160 = vpack.c.b16 %v158, %v157
    %vm163 = vcmask 261120
    %v165 = vsel %vm163, %v140, 0
    %167 = vmatprep.subr.bf16.mxu0 0
    %168 = vmatpush1.bf16.msra.mxu0 %v159
    %169 = vmatprep.subr.bf16.mxu0 0
    %170 = vmatpush1.bf16.msra.mxu0 %v160
    %171 = vmatprep.subr.bf16.mxu0 0
    %172 = vmatpush1.bf16.msra.mxu0 0
    %173 = vmatprep.subr.bf16.mxu0 0
    %174 = vmatpush1.bf16.msra.mxu0 0
    %175 = vmatprep.subr.bf16.mxu0 0
    %176 = vmatpush1.bf16.msra.mxu0 0
    %177 = vmatprep.subr.bf16.mxu0 0
    %178 = vmatpush1.bf16.msra.mxu0 0
    %179 = vmatprep.subr.bf16.mxu0 0
    %180 = vmatpush1.bf16.msra.mxu0 0
    %181 = vmatprep.subr.bf16.mxu0 0
    %182 = vmatpush1.bf16.msra.mxu0 0
    %183 = vmatprep.subr.bf16.mxu0 0
    %184 = vmatpush1.bf16.msra.mxu0 0
    %185 = vmatprep.subr.bf16.mxu0 0
    %186 = vmatpush1.bf16.msra.mxu0 0
    %187 = vmatprep.subr.bf16.mxu0 0
    %188 = vmatpush1.bf16.msra.mxu0 0
    %189 = vmatprep.subr.bf16.mxu0 0
    %190 = vmatpush1.bf16.msra.mxu0 0
    %191 = vmatprep.subr.bf16.mxu0 0
    %192 = vmatpush1.bf16.msra.mxu0 0
    %193 = vmatprep.subr.bf16.mxu0 0
    %194 = vmatpush1.bf16.msra.mxu0 0
    %195 = vmatprep.subr.bf16.mxu0 0
    %196 = vmatpush1.bf16.msra.mxu0 0
    %197 = vmatprep.subr.bf16.mxu0 0
    %198 = vmatpush1.bf16.msra.mxu0 0
    %199 = vmatprep.mubr.bf16.mxu0 0
    %200 = vmatmul.mubr.bf16.gmra.mrb[0].mxu0 %v165
    %v201 = vpop.f32.mrb[0].mxu0
    %v202 = vadd.f32 %v150, %v201
    %v203 = vpop.f32.mrb[0].mxu0
    %v204 = vpop.f32.mrb[0].mxu0
    %v205 = vpop.f32.mrb[0].mxu0
    %206 = vdwg.mxu0
    %v207 = vmax.f32 %v202, 0.0
    %v208 = vmin.f32 %v207, 1.0
    %v209 = vpack.c.bf16 %v208, %v208
    %s210 = scalar_lea.vmem [#allocation2], 48
    %v211 = vld [vmem:[%s210] sm:$0xf]
    %v212 = vld [vmem:[%s210 + $0x4] sm:$0xf]
    %v213 = vld [vmem:[%s210 + $0x8] sm:$0xf]
    %v214 = vld [vmem:[%s210 + $0xc] sm:$0xf]
    %v215 = vld [vmem:[%s3 + $0x2] sm:$0x1]
    %v216 = vlaneseq
    %v217 = vshrl.u32 %v216, 7
    %v218 = vsub.s32 0, %v217
    %v219 = vrot.slane %v215, %v218
    %v224 = vunpack.c.l.b16 %v211
    %v225 = vunpack.c.l.b16 %v212
    %v226 = vunpack.c.l.b16 %v213
    %v227 = vunpack.c.l.b16 %v214
    %v228 = vpack.c.b16 %v225, %v224
    %v229 = vpack.c.b16 %v227, %v226
    %v233 = vsel %vm163, %v209, 0
    %235 = vmatprep.subr.bf16.mxu0 0
    %236 = vmatpush1.bf16.msra.mxu0 %v228
    %237 = vmatprep.subr.bf16.mxu0 0
    %238 = vmatpush1.bf16.msra.mxu0 %v229
    %239 = vmatprep.subr.bf16.mxu0 0
    %240 = vmatpush1.bf16.msra.mxu0 0
    %241 = vmatprep.subr.bf16.mxu0 0
    %242 = vmatpush1.bf16.msra.mxu0 0
    %243 = vmatprep.subr.bf16.mxu0 0
    %244 = vmatpush1.bf16.msra.mxu0 0
    %245 = vmatprep.subr.bf16.mxu0 0
    %246 = vmatpush1.bf16.msra.mxu0 0
    %247 = vmatprep.subr.bf16.mxu0 0
    %248 = vmatpush1.bf16.msra.mxu0 0
    %249 = vmatprep.subr.bf16.mxu0 0
    %250 = vmatpush1.bf16.msra.mxu0 0
    %251 = vmatprep.subr.bf16.mxu0 0
    %252 = vmatpush1.bf16.msra.mxu0 0
    %253 = vmatprep.subr.bf16.mxu0 0
    %254 = vmatpush1.bf16.msra.mxu0 0
    %255 = vmatprep.subr.bf16.mxu0 0
    %256 = vmatpush1.bf16.msra.mxu0 0
    %257 = vmatprep.subr.bf16.mxu0 0
    %258 = vmatpush1.bf16.msra.mxu0 0
    %259 = vmatprep.subr.bf16.mxu0 0
    %260 = vmatpush1.bf16.msra.mxu0 0
    %261 = vmatprep.subr.bf16.mxu0 0
    %262 = vmatpush1.bf16.msra.mxu0 0
    %263 = vmatprep.subr.bf16.mxu0 0
    %264 = vmatpush1.bf16.msra.mxu0 0
    %265 = vmatprep.subr.bf16.mxu0 0
    %266 = vmatpush1.bf16.msra.mxu0 0
    %267 = vmatprep.mubr.bf16.mxu0 0
    %268 = vmatmul.mubr.bf16.gmra.mrb[0].mxu0 %v233
    %v269 = vpop.f32.mrb[0].mxu0
    %v270 = vadd.f32 %v219, %v269
    %v271 = vpop.f32.mrb[0].mxu0
    %v272 = vpop.f32.mrb[0].mxu0
    %v273 = vpop.f32.mrb[0].mxu0
    %274 = vdwg.mxu0
    %v275 = vmax.f32 %v270, 0.0
    %v276 = vld [vmem:[%s3 + $0x3] sm:$0x1]
    %v277 = vlaneseq
    %v278 = vshrl.u32 %v277, 7
    %v279 = vsub.s32 0, %v278
    %v280 = vrot.slane %v276, %v279
    %v281 = vmul.f32 %v275, %v280
    %v282 = vsel %vm163, %v281, 0.0
    %283 = vadd.xlane.f32.xlu0 %v282
    %v284 = vpop.xlane.xlu0 %283
    %vm285 = vcmask 7168
    %286 = vst.msk [vmem:[%s4] sm:$0xff] %vm285, %v284
    // Predicated region
    $region22: #{tpu_custom_call.1} parent=1 // pred_check
      _
    $region23: #{tpu_custom_call.1} parent=1 // pred_check_branch
      %288 = sbr.rel (0) target = $region25
    $region24: #{tpu_custom_call.1} parent=1 // pred_region
      _
    $region25: #{tpu_custom_call.1} parent=1 // pred_fallthru
      _
    // Predicated region
    $region26: #{tpu_custom_call.1} parent=1 // pred_check
      _
    $region27: #{tpu_custom_call.1} parent=1 // pred_check_branch
      %290 = sbr.rel (0) target = $region29
    $region28: #{tpu_custom_call.1} parent=1 // pred_region
      _
    $region29: #{tpu_custom_call.1} parent=1 // pred_fallthru
      _
    %291 = vsyncpa [#allocation3], 1

</llo_original>
